<compile_context>
chip_gen: v7x
topology: tpu7x:2x2x1
jax: 0.10.0
libtpu: 0.0.40
codegen_flags: <defaults>
</compile_context>

<pallas_src>
import jax
import jax.numpy as jnp
from jax.experimental import pallas as pl
from jax.experimental.pallas import tpu as pltpu


def _round_up(x, m):
    return ((x + m - 1) // m) * m


def _fused_decoder_kernel(tok_ref,      # SMEM (T,)   int32 token ids
                          emb_ref,      # VMEM (V, Hp)
                          h0_ref,       # VMEM (1, Hp)
                          w_ih_ref,     # VMEM (Hp, 3*Hp)  gates r|z|n at 128-aligned cols
                          w_hh_ref,     # VMEM (Hp, 3*Hp)
                          b_ih_ref,     # VMEM (1, 3*Hp)   [b_ir | b_iz | b_in]
                          b_hrz_ref,    # VMEM (1, 2*Hp)   [b_hr | b_hz]
                          b_hn_ref,     # VMEM (1, Hp)
                          w_out_ref,    # VMEM (Hp, Op)
                          b_out_ref,    # VMEM (1, Op)     padded cols = -1e30
                          logp_ref,     # out VMEM (T, Op)
                          h_out_ref,    # out VMEM (1, Hp)
                          xs_ref,       # scratch VMEM (T, Hp)    relu(embeddings)
                          gi_ref,       # scratch VMEM (T, 3*Hp)  input-side gate pre-acts
                          hs_ref):      # scratch VMEM (T, Hp)    per-step hidden states
    Hp = h0_ref.shape[1]
    T = logp_ref.shape[0]

    # --- Phase 1: gather relu(embedding(tok_t)) for every step (ids in SMEM). ---
    @pl.loop(0, T)
    def _(t):
        tok = tok_ref[t]
        xs_ref[pl.ds(t, 1), :] = jnp.maximum(emb_ref[pl.ds(tok, 1), :], 0.0)

    # --- Phase 2: input-side GRU projection, batched over all T steps (M=T on MXU). ---
    gi_ref[...] = jnp.dot(xs_ref[...], w_ih_ref[...],
                          preferred_element_type=jnp.float32) + b_ih_ref[...]

    # Small loop-invariant operands — hoist once.
    b_hrz = b_hrz_ref[...]
    b_hn = b_hn_ref[...]

    # --- Phase 3: sequential GRU recurrence (PyTorch gate order r, z, n). Only the
    #     hidden-side (1,Hp)x(Hp,3Hp) matmul remains inside the loop. ---
    def step(t, h):
        gi = gi_ref[pl.ds(t, 1), :]                                         # (1, 3Hp)
        gh = jnp.dot(h, w_hh_ref[...], preferred_element_type=jnp.float32)  # (1, 3Hp)
        rz = jax.nn.sigmoid(gi[:, :2 * Hp] + gh[:, :2 * Hp] + b_hrz)        # (1, 2Hp)
        r = rz[:, :Hp]
        z = rz[:, Hp:]
        n = jnp.tanh(gi[:, 2 * Hp:] + r * (gh[:, 2 * Hp:] + b_hn))
        h_new = (1.0 - z) * n + z * h                                       # (1, Hp)
        hs_ref[pl.ds(t, 1), :] = h_new
        return h_new

    # Fully unroll short decode loops for scheduler visibility; keep a rolled loop
    # for long sequences to bound code size.
    h_final = jax.lax.fori_loop(0, T, step, h0_ref[...], unroll=(T <= 16))
    h_out_ref[...] = h_final

    # --- Phase 4: Linear(hidden -> vocab) + LogSoftmax(dim=1), batched over T rows,
    #     single lane-dense (T, Op) store (Op is a multiple of 128). ---
    logits = jnp.dot(hs_ref[...], w_out_ref[...],
                     preferred_element_type=jnp.float32) + b_out_ref[...]   # (T, Op)
    m = jnp.max(logits, axis=1, keepdims=True)
    shifted = logits - m
    lse = jnp.log(jnp.sum(jnp.exp(shifted), axis=1, keepdims=True))
    logp_ref[...] = shifted - lse


def prepare_params(params):
    """One-time packing: pad to 128 lanes, transpose, split biases per gate.

    Called once; the decode path never transposes / casts / reshapes weights.
    """
    f32 = jnp.float32
    emb = jnp.asarray(params["embedding"], f32)
    V, H = emb.shape
    O = params["w_out"].shape[0]
    Hp = _round_up(H, 128)
    Op = _round_up(O, 128)

    emb_p = jnp.zeros((V, Hp), f32).at[:, :H].set(emb)

    def pack_gates(w):                      # (3H, H) -> (Hp, 3Hp), gate g at cols [g*Hp, g*Hp+H)
        wt = jnp.asarray(w, f32).T          # (H, 3H)
        out = jnp.zeros((Hp, 3 * Hp), f32)
        for g in range(3):
            out = out.at[:H, g * Hp:g * Hp + H].set(wt[:, g * H:(g + 1) * H])
        return out

    b_ih = jnp.asarray(params["b_ih"], f32)
    b_hh = jnp.asarray(params["b_hh"], f32)

    b_ih3 = jnp.zeros((1, 3 * Hp), f32)
    for g in range(3):
        b_ih3 = b_ih3.at[0, g * Hp:g * Hp + H].set(b_ih[g * H:(g + 1) * H])

    b_hrz = jnp.zeros((1, 2 * Hp), f32)
    b_hrz = b_hrz.at[0, :H].set(b_hh[0:H])            # r gate
    b_hrz = b_hrz.at[0, Hp:Hp + H].set(b_hh[H:2 * H])  # z gate

    return {
        "emb": emb_p,
        "w_ih": pack_gates(params["w_ih"]),
        "w_hh": pack_gates(params["w_hh"]),
        "b_ih": b_ih3,
        "b_hrz": b_hrz,
        "b_hn": jnp.zeros((1, Hp), f32).at[0, :H].set(b_hh[2 * H:]),
        "w_out": jnp.zeros((Hp, Op), f32).at[:H, :O].set(jnp.asarray(params["w_out"], f32).T),
        # Padded vocab columns get a huge negative bias -> exp() == 0 in log-softmax.
        "b_out": jnp.full((1, Op), -1e30, f32).at[0, :O].set(jnp.asarray(params["b_out"], f32)),
        "H": H, "O": O, "Hp": Hp, "Op": Op,
    }


def decoder_rnn_decode(tokens, hidden, packed):
    """Run all T decoder steps inside one Pallas kernel (teacher-forced tokens).

    tokens : (T,) int32 token ids
    hidden : (1, 1, H) f32 initial hidden state
    returns: (log_probs (T, O), final hidden (1, 1, H))
    """
    H, O, Hp, Op = packed["H"], packed["O"], packed["Hp"], packed["Op"]
    T = int(tokens.shape[0])
    h0 = jnp.zeros((1, Hp), jnp.float32).at[:, :H].set(
        jnp.asarray(hidden, jnp.float32).reshape(1, H))

    vmem = pl.BlockSpec(memory_space=pltpu.MemorySpace.VMEM)
    smem = pl.BlockSpec(memory_space=pltpu.MemorySpace.SMEM)

    logp_p, h_p = pl.pallas_call(
        _fused_decoder_kernel,
        out_shape=(
            jax.ShapeDtypeStruct((T, Op), jnp.float32),
            jax.ShapeDtypeStruct((1, Hp), jnp.float32),
        ),
        in_specs=[smem] + [vmem] * 9,
        out_specs=(vmem, vmem),
        scratch_shapes=[
            pltpu.VMEM((T, Hp), jnp.float32),       # xs  (relu'd embeddings)
            pltpu.VMEM((T, 3 * Hp), jnp.float32),   # gi  (input-side gate pre-activations)
            pltpu.VMEM((T, Hp), jnp.float32),       # hs  (hidden state per step)
        ],
    )(
        tokens.astype(jnp.int32), packed["emb"], h0,
        packed["w_ih"], packed["w_hh"], packed["b_ih"], packed["b_hrz"],
        packed["b_hn"], packed["w_out"], packed["b_out"],
    )
    return logp_p[:, :O], h_p[:, :H].reshape(1, 1, H)


def decoder_rnn_forward(token, hidden, encoder_output, packed):
    """Exact mirror of DecoderRNN.forward (single step), on top of the fused kernel."""
    tokens = jnp.reshape(jnp.asarray(token, jnp.int32), (1,))
    log_probs, h_new = decoder_rnn_decode(tokens, hidden, packed)
    return log_probs, h_new, encoder_output


def init_params(key, hidden_size, output_size):
    """Raw parameters in PyTorch layout (repacked once by prepare_params)."""
    ks = jax.random.split(key, 7)
    scale = 1.0 / jnp.sqrt(hidden_size)
    return {
        "embedding": jax.random.normal(ks[0], (output_size, hidden_size), jnp.float32),
        "w_ih": jax.random.uniform(ks[1], (3 * hidden_size, hidden_size),
                                   jnp.float32, -scale, scale),
        "w_hh": jax.random.uniform(ks[2], (3 * hidden_size, hidden_size),
                                   jnp.float32, -scale, scale),
        "b_ih": jax.random.uniform(ks[3], (3 * hidden_size,), jnp.float32, -scale, scale),
        "b_hh": jax.random.uniform(ks[4], (3 * hidden_size,), jnp.float32, -scale, scale),
        "w_out": jax.random.uniform(ks[5], (output_size, hidden_size),
                                    jnp.float32, -scale, scale),
        "b_out": jax.random.uniform(ks[6], (output_size,), jnp.float32, -scale, scale),
    }


def reference_decode(tokens, hidden, params):
    """Pure-JAX mirror of the PyTorch math, for correctness checking."""
    H = params["embedding"].shape[1]
    h = jnp.asarray(hidden, jnp.float32).reshape(1, H)
    outs = []
    for t in range(int(tokens.shape[0])):
        x = jnp.maximum(params["embedding"][tokens[t]].reshape(1, H), 0.0)
        gi = x @ params["w_ih"].T + params["b_ih"]
        gh = h @ params["w_hh"].T + params["b_hh"]
        r = jax.nn.sigmoid(gi[:, :H] + gh[:, :H])
        z = jax.nn.sigmoid(gi[:, H:2 * H] + gh[:, H:2 * H])
        n = jnp.tanh(gi[:, 2 * H:] + r * gh[:, 2 * H:])
        h = (1.0 - z) * n + z * h
        logits = h @ params["w_out"].T + params["b_out"]
        outs.append(jax.nn.log_softmax(logits, axis=1))
    return jnp.concatenate(outs, axis=0), h.reshape(1, 1, H)


if __name__ == "__main__":
    hidden_size = 32
    output_size = 128
    seq_len = 8        # encoder length (pass-through only)
    T = 8              # decode steps fused into one pallas_call

    key = jax.random.PRNGKey(0)
    k_params, k_enc, k_tok = jax.random.split(key, 3)

    params = init_params(k_params, hidden_size, output_size)
    packed = prepare_params(params)

    hidden0 = jnp.zeros((1, 1, hidden_size), jnp.float32)        # initHidden()
    encoder_output = jax.random.normal(k_enc, (seq_len, hidden_size), jnp.float32)
    tokens = jax.random.randint(k_tok, (T,), 0, output_size, dtype=jnp.int32)

    # (a) single step — exact mirror of DecoderRNN.forward
    log_probs1, hidden1, enc_out = decoder_rnn_forward(tokens[0], hidden0,
                                                       encoder_output, packed)
    # (b) fused multi-step decode — all T steps inside one kernel, weights stay VMEM-resident
    log_probs, hidden_T = decoder_rnn_decode(tokens, hidden0, packed)
    jax.block_until_ready((log_probs1, hidden1, enc_out, log_probs, hidden_T))

    assert log_probs1.shape == (1, output_size)
    assert hidden1.shape == (1, 1, hidden_size)
    assert log_probs.shape == (T, output_size)
    assert hidden_T.shape == (1, 1, hidden_size)

    # LogSoftmax sanity: each row is a proper distribution.
    row_sums = jnp.sum(jnp.exp(log_probs), axis=1)
    assert bool(jnp.all(jnp.abs(row_sums - 1.0) < 1e-3))

    # Matches the plain-JAX reference of the PyTorch math.
    ref_logp, ref_h = reference_decode(tokens, hidden0, params)
    assert bool(jnp.allclose(log_probs, ref_logp, atol=2e-2))
    assert bool(jnp.allclose(hidden_T, ref_h, atol=2e-2))
    assert bool(jnp.allclose(log_probs1, ref_logp[:1], atol=2e-2))

    print("KERNEL_OK")
</pallas_src>

<mosaic_0001>
module attributes {stable_mosaic.version = 11 : i64} {
  func.func @_fused_decoder_kernel(%arg0: memref<1xi32, #tpu.memory_space<smem>>, %arg1: memref<128x128xf32, #tpu.memory_space<vmem>>, %arg2: memref<1x128xf32, #tpu.memory_space<vmem>>, %arg3: memref<128x384xf32, #tpu.memory_space<vmem>>, %arg4: memref<128x384xf32, #tpu.memory_space<vmem>>, %arg5: memref<1x384xf32, #tpu.memory_space<vmem>>, %arg6: memref<1x256xf32, #tpu.memory_space<vmem>>, %arg7: memref<1x128xf32, #tpu.memory_space<vmem>>, %arg8: memref<128x128xf32, #tpu.memory_space<vmem>>, %arg9: memref<1x128xf32, #tpu.memory_space<vmem>>, %arg10: memref<1x128xf32, #tpu.memory_space<vmem>>, %arg11: memref<1x128xf32, #tpu.memory_space<vmem>>, %arg12: memref<1x128xf32, #tpu.memory_space<vmem>>, %arg13: memref<1x384xf32, #tpu.memory_space<vmem>>, %arg14: memref<1x128xf32, #tpu.memory_space<vmem>>) attributes {dimension_semantics = [], scalar_prefetch = 0 : i64, scratch_operands = 3 : i64, tpu.core_type = #tpu.core_type<tc>} {
    %c0_i32 = arith.constant 0 : i32
    %c1_i32 = arith.constant 1 : i32
    %0 = arith.muli %c0_i32, %c1_i32 : i32
    %c0_i32_0 = arith.constant 0 : i32
    %1 = arith.addi %c0_i32_0, %0 : i32
    %2 = arith.index_cast %1 : i32 to index
    %3 = memref.load %arg0[%2] : memref<1xi32, #tpu.memory_space<smem>>
    %4 = arith.index_cast %3 : i32 to index
    %c0 = arith.constant 0 : index
    %5 = vector.load %arg1[%4, %c0] : memref<128x128xf32, #tpu.memory_space<vmem>>, vector<1x128xf32>
    %cst = arith.constant 0.000000e+00 : f32
    %6 = vector.broadcast %cst : f32 to vector<1x128xf32>
    %7 = arith.maximumf %5, %6 : vector<1x128xf32>
    %8 = arith.index_cast %1 : i32 to index
    %c0_1 = arith.constant 0 : index
    %9 = vector.load %arg12[%8, %c0_1] : memref<1x128xf32, #tpu.memory_space<vmem>>, vector<1x128xf32>
    tpu.vector_store %arg12[%8, %c0_1], %7 {strides = array<i32>} : memref<1x128xf32, #tpu.memory_space<vmem>>, vector<1x128xf32>,
    %c1_i32_2 = arith.constant 1 : i32
    %c0_3 = arith.constant 0 : index
    %c0_4 = arith.constant 0 : index
    %10 = vector.load %arg12[%c0_3, %c0_4] : memref<1x128xf32, #tpu.memory_space<vmem>>, vector<1x128xf32>
    %c0_5 = arith.constant 0 : index
    %c0_6 = arith.constant 0 : index
    %11 = vector.load %arg3[%c0_5, %c0_6] : memref<128x384xf32, #tpu.memory_space<vmem>>, vector<128x384xf32>
    %cst_7 = arith.constant dense<0.000000e+00> : vector<1x384xf32>
    %12 = tpu.matmul %10, %11, %cst_7 {dimension_numbers = #tpu.dot_dimension_numbers<[1], [0], [0], [1], [0, 0, 1, 1], [], []>} : vector<1x128xf32>, vector<128x384xf32>, vector<1x384xf32> -> vector<1x384xf32>
    %c0_8 = arith.constant 0 : index
    %c0_9 = arith.constant 0 : index
    %13 = vector.load %arg5[%c0_8, %c0_9] : memref<1x384xf32, #tpu.memory_space<vmem>>, vector<1x384xf32>
    %14 = arith.addf %12, %13 : vector<1x384xf32>
    %c0_10 = arith.constant 0 : index
    %c0_11 = arith.constant 0 : index
    %15 = vector.load %arg13[%c0_10, %c0_11] : memref<1x384xf32, #tpu.memory_space<vmem>>, vector<1x384xf32>
    tpu.vector_store %arg13[%c0_10, %c0_11], %14 {strides = array<i32>} : memref<1x384xf32, #tpu.memory_space<vmem>>, vector<1x384xf32>,
    %c0_12 = arith.constant 0 : index
    %c0_13 = arith.constant 0 : index
    %16 = vector.load %arg6[%c0_12, %c0_13] : memref<1x256xf32, #tpu.memory_space<vmem>>, vector<1x256xf32>
    %c0_14 = arith.constant 0 : index
    %c0_15 = arith.constant 0 : index
    %17 = vector.load %arg7[%c0_14, %c0_15] : memref<1x128xf32, #tpu.memory_space<vmem>>, vector<1x128xf32>
    %c0_16 = arith.constant 0 : index
    %c0_17 = arith.constant 0 : index
    %18 = vector.load %arg2[%c0_16, %c0_17] : memref<1x128xf32, #tpu.memory_space<vmem>>, vector<1x128xf32>
    %c0_i32_18 = arith.constant 0 : i32
    %19 = arith.index_cast %c0_i32_18 : i32 to index
    %c0_19 = arith.constant 0 : index
    %20 = vector.load %arg13[%19, %c0_19] : memref<1x384xf32, #tpu.memory_space<vmem>>, vector<1x384xf32>
    %c0_20 = arith.constant 0 : index
    %c0_21 = arith.constant 0 : index
    %21 = vector.load %arg4[%c0_20, %c0_21] : memref<128x384xf32, #tpu.memory_space<vmem>>, vector<128x384xf32>
    %cst_22 = arith.constant dense<0.000000e+00> : vector<1x384xf32>
    %22 = tpu.matmul %18, %21, %cst_22 {dimension_numbers = #tpu.dot_dimension_numbers<[1], [0], [0], [1], [0, 0, 1, 1], [], []>} : vector<1x128xf32>, vector<128x384xf32>, vector<1x384xf32> -> vector<1x384xf32>
    %23 = vector.extract_strided_slice %20 {offsets = [0, 0], sizes = [1, 256], strides = [1, 1]} : vector<1x384xf32> to vector<1x256xf32>
    %24 = vector.extract_strided_slice %22 {offsets = [0, 0], sizes = [1, 256], strides = [1, 1]} : vector<1x384xf32> to vector<1x256xf32>
    %25 = arith.addf %23, %24 : vector<1x256xf32>
    %26 = arith.addf %25, %16 : vector<1x256xf32>
    %27 = arith.negf %26 : vector<1x256xf32>
    %28 = math.exp %27 : vector<1x256xf32>
    %cst_23 = arith.constant 1.000000e+00 : f32
    %29 = vector.broadcast %cst_23 : f32 to vector<1x256xf32>
    %30 = arith.addf %29, %28 : vector<1x256xf32>
    %31 = arith.divf %29, %30 : vector<1x256xf32>
    %32 = vector.extract_strided_slice %31 {offsets = [0, 0], sizes = [1, 128], strides = [1, 1]} : vector<1x256xf32> to vector<1x128xf32>
    %33 = vector.extract_strided_slice %31 {offsets = [0, 128], sizes = [1, 128], strides = [1, 1]} : vector<1x256xf32> to vector<1x128xf32>
    %34 = vector.extract_strided_slice %20 {offsets = [0, 256], sizes = [1, 128], strides = [1, 1]} : vector<1x384xf32> to vector<1x128xf32>
    %35 = vector.extract_strided_slice %22 {offsets = [0, 256], sizes = [1, 128], strides = [1, 1]} : vector<1x384xf32> to vector<1x128xf32>
    %36 = arith.addf %35, %17 : vector<1x128xf32>
    %37 = arith.mulf %32, %36 : vector<1x128xf32>
    %38 = arith.addf %34, %37 : vector<1x128xf32>
    %39 = math.tanh %38 : vector<1x128xf32>
    %cst_24 = arith.constant 1.000000e+00 : f32
    %40 = vector.broadcast %cst_24 : f32 to vector<1x128xf32>
    %41 = arith.subf %40, %33 : vector<1x128xf32>
    %42 = arith.mulf %41, %39 : vector<1x128xf32>
    %43 = arith.mulf %33, %18 : vector<1x128xf32>
    %44 = arith.addf %42, %43 : vector<1x128xf32>
    %45 = arith.index_cast %c0_i32_18 : i32 to index
    %c0_25 = arith.constant 0 : index
    %46 = vector.load %arg14[%45, %c0_25] : memref<1x128xf32, #tpu.memory_space<vmem>>, vector<1x128xf32>
    tpu.vector_store %arg14[%45, %c0_25], %44 {strides = array<i32>} : memref<1x128xf32, #tpu.memory_space<vmem>>, vector<1x128xf32>,
    %c1_i32_26 = arith.constant 1 : i32
    %c0_27 = arith.constant 0 : index
    %c0_28 = arith.constant 0 : index
    %47 = vector.load %arg11[%c0_27, %c0_28] : memref<1x128xf32, #tpu.memory_space<vmem>>, vector<1x128xf32>
    tpu.vector_store %arg11[%c0_27, %c0_28], %44 {strides = array<i32>} : memref<1x128xf32, #tpu.memory_space<vmem>>, vector<1x128xf32>,
    %c0_29 = arith.constant 0 : index
    %c0_30 = arith.constant 0 : index
    %48 = vector.load %arg14[%c0_29, %c0_30] : memref<1x128xf32, #tpu.memory_space<vmem>>, vector<1x128xf32>
    %c0_31 = arith.constant 0 : index
    %c0_32 = arith.constant 0 : index
    %49 = vector.load %arg8[%c0_31, %c0_32] : memref<128x128xf32, #tpu.memory_space<vmem>>, vector<128x128xf32>
    %cst_33 = arith.constant dense<0.000000e+00> : vector<1x128xf32>
    %50 = tpu.matmul %48, %49, %cst_33 {dimension_numbers = #tpu.dot_dimension_numbers<[1], [0], [0], [1], [0, 0, 1, 1], [], []>} : vector<1x128xf32>, vector<128x128xf32>, vector<1x128xf32> -> vector<1x128xf32>
    %c0_34 = arith.constant 0 : index
    %c0_35 = arith.constant 0 : index
    %51 = vector.load %arg9[%c0_34, %c0_35] : memref<1x128xf32, #tpu.memory_space<vmem>>, vector<1x128xf32>
    %52 = arith.addf %50, %51 : vector<1x128xf32>
    %cst_36 = arith.constant dense<0xFF800000> : vector<1xf32>
    %53 = vector.multi_reduction <maximumf>, %52, %cst_36 [1] : vector<1x128xf32> to vector<1xf32>
    %54 = vector.shape_cast %53 : vector<1xf32> to vector<1x1xf32>
    %55 = vector.broadcast %54 : vector<1x1xf32> to vector<1x128xf32>
    %56 = arith.subf %52, %55 : vector<1x128xf32>
    %57 = math.exp %56 : vector<1x128xf32>
    %cst_37 = arith.constant dense<0.000000e+00> : vector<1xf32>
    %58 = vector.multi_reduction <add>, %57, %cst_37 [1] : vector<1x128xf32> to vector<1xf32>
    %59 = vector.shape_cast %58 : vector<1xf32> to vector<1x1xf32>
    %60 = math.log %59 : vector<1x1xf32>
    %61 = vector.broadcast %60 : vector<1x1xf32> to vector<1x128xf32>
    %62 = arith.subf %56, %61 : vector<1x128xf32>
    %c0_38 = arith.constant 0 : index
    %c0_39 = arith.constant 0 : index
    %63 = vector.load %arg10[%c0_38, %c0_39] : memref<1x128xf32, #tpu.memory_space<vmem>>, vector<1x128xf32>
    tpu.vector_store %arg10[%c0_38, %c0_39], %62 {strides = array<i32>} : memref<1x128xf32, #tpu.memory_space<vmem>>, vector<1x128xf32>,
    return
  }
}

</mosaic_0001>

<llo_original>
// kernel: tpu_custom_call.1
$region0: #{tpu_custom_call.1}
  #allocation0 [shape = 'u32[]', space=smem, size = 0x4, offset = 0x4, fixed_abs, tag = 'smem constant byte address 0x4 - core index']
  #allocation1 [shape = 'u32[144,128]{1,0:T(1,128)}', space=vmem, size = 0x12000, scoped, tag = 'internal scratch']
  #allocation2 [shape = 'f32[1,128]{1,0:T(1,128)}', space=vmem, size = 0x200, scoped, tag = 'scratch operand']
  #allocation3 [shape = 'f32[1,384]{1,0:T(1,128)}', space=vmem, size = 0x600, scoped, tag = 'scratch operand']
  #allocation4 [shape = 'f32[1,128]{1,0:T(1,128)}', space=vmem, size = 0x200, scoped, tag = 'scratch operand']
  #allocation5 [shape = 's32[1]{0:T(128)S(6)}', space=smem, size = 0x200, scoped, tag = 'scoped memory for tpu_custom_call.1']
  %s0 = inlined_call_operand.<no memory space> [shape: s32[1], index: 0, kind: input, shape index: {}]
  %s1 = inlined_call_operand.hbm [shape: f32[128,128], index: 1, kind: input, shape index: {}]
  %s2 = inlined_call_operand.vmem [shape: f32[1,128], index: 2, kind: input, shape index: {}]
  %s3 = inlined_call_operand.hbm [shape: f32[128,384], index: 3, kind: input, shape index: {}]
  %s4 = inlined_call_operand.hbm [shape: f32[128,384], index: 4, kind: input, shape index: {}]
  %s5 = inlined_call_operand.vmem [shape: f32[1,384], index: 5, kind: input, shape index: {}]
  %s6 = inlined_call_operand.vmem [shape: f32[1,256], index: 6, kind: input, shape index: {}]
  %s7 = inlined_call_operand.vmem [shape: f32[1,128], index: 7, kind: input, shape index: {}]
  %s8 = inlined_call_operand.hbm [shape: f32[128,128], index: 8, kind: input, shape index: {}]
  %s9 = inlined_call_operand.vmem [shape: f32[1,128], index: 9, kind: input, shape index: {}]
  %s10 = inlined_call_operand.hbm [shape: f32[1,128], index: 10, kind: output, shape index: {0}]
  %s11 = inlined_call_operand.hbm [shape: f32[1,128], index: 11, kind: output, shape index: {1}]
  %12 = xla_tuple %s10, %s11
  %s13 = sld [smem:[#allocation0]]
  $region74: #{tpu_custom_call.1} parent=0
    _
  %s15 = ssub.s32 1, %s13
  %s16 = scalar_select 0, %s15, %s13
  %17 = sst [smem:[#allocation5]] %s0
  $region1: #{tpu_custom_call.1} parent=0
    #allocation6 [shape = 'u8[65536]{0}', space=vmem, size = 0x10000, scoped, tag = 'input window, operand 1, single buffered']
    #allocation7 [shape = 's32[1]{0}', space=sflag, size = 0x4, scoped, tag = 'scoped memory for tpu_custom_call.1']
    #allocation8 [shape = 's32[1]{0}', space=sflag, size = 0x4, scoped, tag = 'scoped memory for tpu_custom_call.1']
    #allocation9 [shape = 'u8[196608]{0}', space=vmem, size = 0x30000, scoped, tag = 'input window, operand 3, single buffered']
    #allocation10 [shape = 's32[1]{0}', space=sflag, size = 0x4, scoped, tag = 'scoped memory for tpu_custom_call.1']
    #allocation11 [shape = 'u8[196608]{0}', space=vmem, size = 0x30000, scoped, tag = 'input window, operand 4, single buffered']
    #allocation12 [shape = 'u8[65536]{0}', space=vmem, size = 0x10000, scoped, tag = 'input window, operand 8, single buffered']
    #allocation13 [shape = 's32[1]{0}', space=sflag, size = 0x4, scoped, tag = 'scoped memory for tpu_custom_call.1']
    #allocation14 [shape = 'u8[512]{0}', space=vmem, size = 0x400, scoped, tag = 'output window, operand 0, single buffered']
    #allocation15 [shape = 'u8[512]{0}', space=vmem, size = 0x400, scoped, tag = 'output window, operand 1, single buffered']
    #allocation16 [shape = 's32[1]{0}', space=sflag, size = 0x4, scoped, tag = 'scoped memory for tpu_custom_call.1']
    %18 = vsyncpa [#allocation7], 0
    %19 = vsyncpa [#allocation10], 0
    %20 = vsyncpa [#allocation13], 0
    %21 = vsyncpa [#allocation8], 0
    %22 = vsyncpa [#allocation16], 0
    // Predicated region
    $region2: #{tpu_custom_call.1} parent=1 // pred_check
      _
    $region3: #{tpu_custom_call.1} parent=1 // pred_check_branch
      %24 = sbr.rel (0) target = $region5
    $region4: #{tpu_custom_call.1} parent=1 // pred_region
      _
    $region5: #{tpu_custom_call.1} parent=1 // pred_fallthru
      _
    // Predicated region
    $region6: #{tpu_custom_call.1} parent=1 // pred_check
      _
    $region7: #{tpu_custom_call.1} parent=1 // pred_check_branch
      %26 = sbr.rel (0) target = $region9
    $region8: #{tpu_custom_call.1} parent=1 // pred_region
      %s28 = ssub.s32 2048, 2048
      %29 = vsyncadd [#allocation7], %s28
      %s30 = sshll.u32 [#allocation6], 4
      %s31 = int_to_ptr.vmem [resolvable:$true] %s30
      %36 = dma.hbm_to_vmem [thread:$0]  %s1, 2048, %s31, [#allocation7], 128, 128, 8
    $region9: #{tpu_custom_call.1} parent=1 // pred_fallthru
      _
    // Predicated region
    $region10: #{tpu_custom_call.1} parent=1 // pred_check
      _
    $region11: #{tpu_custom_call.1} parent=1 // pred_check_branch
      %38 = sbr.rel (0) target = $region13
    $region12: #{tpu_custom_call.1} parent=1 // pred_region
      _
    $region13: #{tpu_custom_call.1} parent=1 // pred_fallthru
      _
    // Predicated region
    $region14: #{tpu_custom_call.1} parent=1 // pred_check
      _
    $region15: #{tpu_custom_call.1} parent=1 // pred_check_branch
      %40 = sbr.rel (0) target = $region17
    $region16: #{tpu_custom_call.1} parent=1 // pred_region
      %s42 = ssub.s32 6144, 6144
      %43 = vsyncadd [#allocation10], %s42
      %s44 = sshll.u32 [#allocation9], 4
      %s45 = int_to_ptr.vmem [resolvable:$true] %s44
      %50 = dma.hbm_to_vmem [thread:$0]  %s3, 6144, %s45, [#allocation10], 384, 384, 24
    $region17: #{tpu_custom_call.1} parent=1 // pred_fallthru
      _
    // Predicated region
    $region18: #{tpu_custom_call.1} parent=1 // pred_check
      _
    $region19: #{tpu_custom_call.1} parent=1 // pred_check_branch
      %52 = sbr.rel (0) target = $region21
    $region20: #{tpu_custom_call.1} parent=1 // pred_region
      %s54 = ssub.s32 6144, 6144
      %55 = vsyncadd [#allocation10], %s54
      %s56 = sshll.u32 [#allocation11], 4
      %s57 = int_to_ptr.vmem [resolvable:$true] %s56
      %62 = dma.hbm_to_vmem [thread:$0]  %s4, 6144, %s57, [#allocation10], 384, 384, 24
    $region21: #{tpu_custom_call.1} parent=1 // pred_fallthru
      _
    // Predicated region
    $region22: #{tpu_custom_call.1} parent=1 // pred_check
      _
    $region23: #{tpu_custom_call.1} parent=1 // pred_check_branch
      %64 = sbr.rel (0) target = $region25
    $region24: #{tpu_custom_call.1} parent=1 // pred_region
      _
    $region25: #{tpu_custom_call.1} parent=1 // pred_fallthru
      _
    // Predicated region
    $region26: #{tpu_custom_call.1} parent=1 // pred_check
      _
    $region27: #{tpu_custom_call.1} parent=1 // pred_check_branch
      %66 = sbr.rel (0) target = $region29
    $region28: #{tpu_custom_call.1} parent=1 // pred_region
      _
    $region29: #{tpu_custom_call.1} parent=1 // pred_fallthru
      _
    // Predicated region
    $region30: #{tpu_custom_call.1} parent=1 // pred_check
      _
    $region31: #{tpu_custom_call.1} parent=1 // pred_check_branch
      %68 = sbr.rel (0) target = $region33
    $region32: #{tpu_custom_call.1} parent=1 // pred_region
      _
    $region33: #{tpu_custom_call.1} parent=1 // pred_fallthru
      _
    // Predicated region
    $region34: #{tpu_custom_call.1} parent=1 // pred_check
      _
    $region35: #{tpu_custom_call.1} parent=1 // pred_check_branch
      %70 = sbr.rel (0) target = $region37
    $region36: #{tpu_custom_call.1} parent=1 // pred_region
      %s72 = ssub.s32 2048, 2048
      %73 = vsyncadd [#allocation13], %s72
      %s74 = sshll.u32 [#allocation12], 4
      %s75 = int_to_ptr.vmem [resolvable:$true] %s74
      %80 = dma.hbm_to_vmem [thread:$0]  %s8, 2048, %s75, [#allocation13], 128, 128, 8
    $region37: #{tpu_custom_call.1} parent=1 // pred_fallthru
      _
    // Predicated region
    $region38: #{tpu_custom_call.1} parent=1 // pred_check
      _
    $region39: #{tpu_custom_call.1} parent=1 // pred_check_branch
      %82 = sbr.rel (0) target = $region41
    $region40: #{tpu_custom_call.1} parent=1 // pred_region
      _
    $region41: #{tpu_custom_call.1} parent=1 // pred_fallthru
      _
    // Predicated region
    $region42: #{tpu_custom_call.1} parent=1 // pred_check
      _
    $region43: #{tpu_custom_call.1} parent=1 // pred_check_branch
      %84 = sbr.rel (0) target = $region45
    $region44: #{tpu_custom_call.1} parent=1 // pred_region
      %85 = dma.done [#allocation7], 2048
    $region45: #{tpu_custom_call.1} parent=1 // pred_fallthru
      _
    // Predicated region
    $region46: #{tpu_custom_call.1} parent=1 // pred_check
      _
    $region47: #{tpu_custom_call.1} parent=1 // pred_check_branch
      %87 = sbr.rel (0) target = $region49
    $region48: #{tpu_custom_call.1} parent=1 // pred_region
      %88 = dma.done [#allocation10], 6144
    $region49: #{tpu_custom_call.1} parent=1 // pred_fallthru
      _
    // Predicated region
    $region50: #{tpu_custom_call.1} parent=1 // pred_check
      _
    $region51: #{tpu_custom_call.1} parent=1 // pred_check_branch
      %90 = sbr.rel (0) target = $region53
    $region52: #{tpu_custom_call.1} parent=1 // pred_region
      %91 = dma.done [#allocation10], 6144
    $region53: #{tpu_custom_call.1} parent=1 // pred_fallthru
      _
    // Predicated region
    $region54: #{tpu_custom_call.1} parent=1 // pred_check
      _
    $region55: #{tpu_custom_call.1} parent=1 // pred_check_branch
      %93 = sbr.rel (0) target = $region57
    $region56: #{tpu_custom_call.1} parent=1 // pred_region
      %94 = dma.done [#allocation13], 2048
    $region57: #{tpu_custom_call.1} parent=1 // pred_fallthru
      _
    %s95 = sld [smem:[#allocation5]]
    %s96 = scalar_lea.vmem [#allocation6], %s95
    %v97 = vld [vmem:[%s96] sm:$0x1]
    %v98 = vmax.f32 %v97, 0.0
    %99 = vst [vmem:[#allocation2] sm:$0x1] %v98
    %v100 = vld [vmem:[#allocation2] sm:$0x1]
    %v101 = vld [vmem:[#allocation9] sm:$0xff]
    %v102 = vld [vmem:[#allocation9 + $0x8] sm:$0xff]
    %v103 = vld [vmem:[#allocation9 + $0x10] sm:$0xff]
    %v104 = vld [vmem:[#allocation9 + $0x18] sm:$0xff]
    %v105 = vld [vmem:[#allocation9 + $0x20] sm:$0xff]
    %v106 = vld [vmem:[#allocation9 + $0x28] sm:$0xff]
    %v107 = vld [vmem:[#allocation9 + $0x30] sm:$0xff]
    %v108 = vld [vmem:[#allocation9 + $0x38] sm:$0xff]
    %v109 = vld [vmem:[#allocation9 + $0x40] sm:$0xff]
    %v110 = vld [vmem:[#allocation9 + $0x48] sm:$0xff]
    %v111 = vld [vmem:[#allocation9 + $0x50] sm:$0xff]
    %v112 = vld [vmem:[#allocation9 + $0x58] sm:$0xff]
    %v113 = vld [vmem:[#allocation9 + $0x60] sm:$0xff]
    %v114 = vld [vmem:[#allocation9 + $0x68] sm:$0xff]
    %v115 = vld [vmem:[#allocation9 + $0x70] sm:$0xff]
    %v116 = vld [vmem:[#allocation9 + $0x78] sm:$0xff]
    %v117 = vld [vmem:[#allocation9 + $0x80] sm:$0xff]
    %v118 = vld [vmem:[#allocation9 + $0x88] sm:$0xff]
    %v119 = vld [vmem:[#allocation9 + $0x90] sm:$0xff]
    %v120 = vld [vmem:[#allocation9 + $0x98] sm:$0xff]
    %v121 = vld [vmem:[#allocation9 + $0xa0] sm:$0xff]
    %v122 = vld [vmem:[#allocation9 + $0xa8] sm:$0xff]
    %v123 = vld [vmem:[#allocation9 + $0xb0] sm:$0xff]
    %v124 = vld [vmem:[#allocation9 + $0xb8] sm:$0xff]
    %v125 = vld [vmem:[#allocation9 + $0xc0] sm:$0xff]
    %v126 = vld [vmem:[#allocation9 + $0xc8] sm:$0xff]
    %v127 = vld [vmem:[#allocation9 + $0xd0] sm:$0xff]
    %v128 = vld [vmem:[#allocation9 + $0xd8] sm:$0xff]
    %v129 = vld [vmem:[#allocation9 + $0xe0] sm:$0xff]
    %v130 = vld [vmem:[#allocation9 + $0xe8] sm:$0xff]
    %v131 = vld [vmem:[#allocation9 + $0xf0] sm:$0xff]
    %v132 = vld [vmem:[#allocation9 + $0xf8] sm:$0xff]
    %v133 = vld [vmem:[#allocation9 + $0x100] sm:$0xff]
    %v134 = vld [vmem:[#allocation9 + $0x108] sm:$0xff]
    %v135 = vld [vmem:[#allocation9 + $0x110] sm:$0xff]
    %v136 = vld [vmem:[#allocation9 + $0x118] sm:$0xff]
    %v137 = vld [vmem:[#allocation9 + $0x120] sm:$0xff]
    %v138 = vld [vmem:[#allocation9 + $0x128] sm:$0xff]
    %v139 = vld [vmem:[#allocation9 + $0x130] sm:$0xff]
    %v140 = vld [vmem:[#allocation9 + $0x138] sm:$0xff]
    %v141 = vld [vmem:[#allocation9 + $0x140] sm:$0xff]
    %v142 = vld [vmem:[#allocation9 + $0x148] sm:$0xff]
    %v143 = vld [vmem:[#allocation9 + $0x150] sm:$0xff]
    %v144 = vld [vmem:[#allocation9 + $0x158] sm:$0xff]
    %v145 = vld [vmem:[#allocation9 + $0x160] sm:$0xff]
    %v146 = vld [vmem:[#allocation9 + $0x168] sm:$0xff]
    %v147 = vld [vmem:[#allocation9 + $0x170] sm:$0xff]
    %v148 = vld [vmem:[#allocation9 + $0x178] sm:$0xff]
    %v149 = vld [vmem:[%s5] sm:$0x7]
    %v151 = vlaneseq
    %v152 = vshrl.u32 %v151, 7
    %v153 = vsub.s32 0, %v152
    %v154 = vrot.slane %v149, %v153
    %v155 = vlaneseq
    %v156 = vshrl.u32 %v155, 7
    %v157 = vsub.s32 1, %v156
    %v158 = vrot.slane %v149, %v157
    %v159 = vlaneseq
    %v160 = vshrl.u32 %v159, 7
    %v161 = vsub.s32 2, %v160
    %v162 = vrot.slane %v149, %v161
    %166 = vmatprep.subr.mxu0 %v102
    %167 = vmatpush1.msra.mxu0 %v101
    %168 = vmatprep.subr.mxu0 %v105
    %169 = vmatpush1.msra.mxu0 %v104
    %170 = vmatprep.subr.mxu0 %v108
    %171 = vmatpush1.msra.mxu0 %v107
    %172 = vmatprep.subr.mxu0 %v111
    %173 = vmatpush1.msra.mxu0 %v110
    %174 = vmatprep.subr.mxu0 %v114
    %175 = vmatpush1.msra.mxu0 %v113
    %176 = vmatprep.subr.mxu0 %v117
    %177 = vmatpush1.msra.mxu0 %v116
    %178 = vmatprep.subr.mxu0 %v120
    %179 = vmatpush1.msra.mxu0 %v119
    %180 = vmatprep.subr.mxu0 %v123
    %181 = vmatpush1.msra.mxu0 %v122
    %182 = vmatprep.subr.mxu0 %v126
    %183 = vmatpush1.msra.mxu0 %v125
    %184 = vmatprep.subr.mxu0 %v129
    %185 = vmatpush1.msra.mxu0 %v128
    %186 = vmatprep.subr.mxu0 %v132
    %187 = vmatpush1.msra.mxu0 %v131
    %188 = vmatprep.subr.mxu0 %v135
    %189 = vmatpush1.msra.mxu0 %v134
    %190 = vmatprep.subr.mxu0 %v138
    %191 = vmatpush1.msra.mxu0 %v137
    %192 = vmatprep.subr.mxu0 %v141
    %193 = vmatpush1.msra.mxu0 %v140
    %194 = vmatprep.subr.mxu0 %v144
    %195 = vmatpush1.msra.mxu0 %v143
    %196 = vmatprep.subr.mxu0 %v147
    %197 = vmatpush1.msra.mxu0 %v146
    %198 = vmatprep.subr.mxu0 0.0
    %199 = vmatpush1.msra.mxu0 0.0
    %200 = vmatprep.subr.mxu0 0.0
    %201 = vmatpush1.msra.mxu0 0.0
    %202 = vmatprep.subr.mxu0 0.0
    %203 = vmatpush1.msra.mxu0 0.0
    %204 = vmatprep.subr.mxu0 0.0
    %205 = vmatpush1.msra.mxu0 0.0
    %206 = vmatprep.subr.mxu0 0.0
    %207 = vmatpush1.msra.mxu0 0.0
    %208 = vmatprep.subr.mxu0 0.0
    %209 = vmatpush1.msra.mxu0 0.0
    %210 = vmatprep.subr.mxu0 0.0
    %211 = vmatpush1.msra.mxu0 0.0
    %212 = vmatprep.subr.mxu0 0.0
    %213 = vmatpush1.msra.mxu0 0.0
    %214 = vmatprep.subr.mxu0 0.0
    %215 = vmatpush1.msra.mxu0 0.0
    %216 = vmatprep.subr.mxu0 0.0
    %217 = vmatpush1.msra.mxu0 0.0
    %218 = vmatprep.subr.mxu0 0.0
    %219 = vmatpush1.msra.mxu0 0.0
    %220 = vmatprep.subr.mxu0 0.0
    %221 = vmatpush1.msra.mxu0 0.0
    %222 = vmatprep.subr.mxu0 0.0
    %223 = vmatpush1.msra.mxu0 0.0
    %224 = vmatprep.subr.mxu0 0.0
    %225 = vmatpush1.msra.mxu0 0.0
    %226 = vmatprep.subr.mxu0 0.0
    %227 = vmatpush1.msra.mxu0 0.0
    %228 = vmatprep.subr.mxu0 0.0
    %229 = vmatpush1.msra.mxu0 0.0
    %230 = vmatprep.mubr.f32.mxu0 0.0
    %231 = vmatmul.mubr.f32.gmra.mrb[0].mxu0 %v100
    %v232 = vpop.f32.mrb[0].mxu0
    %v233 = vadd.f32 %v154, %v232
    %v234 = vpop.f32.mrb[0].mxu0
    %v235 = vadd.f32 %v158, %v234
    %236 = vdwg.mxu0
    %237 = vmatprep.subr.mxu0 0.0
    %238 = vmatpush1.msra.mxu0 %v103
    %239 = vmatprep.subr.mxu0 0.0
    %240 = vmatpush1.msra.mxu0 %v106
    %241 = vmatprep.subr.mxu0 0.0
    %242 = vmatpush1.msra.mxu0 %v109
    %243 = vmatprep.subr.mxu0 0.0
    %244 = vmatpush1.msra.mxu0 %v112
    %245 = vmatprep.subr.mxu0 0.0
    %246 = vmatpush1.msra.mxu0 %v115
    %247 = vmatprep.subr.mxu0 0.0
    %248 = vmatpush1.msra.mxu0 %v118
    %249 = vmatprep.subr.mxu0 0.0
    %250 = vmatpush1.msra.mxu0 %v121
    %251 = vmatprep.subr.mxu0 0.0
    %252 = vmatpush1.msra.mxu0 %v124
    %253 = vmatprep.subr.mxu0 0.0
    %254 = vmatpush1.msra.mxu0 %v127
    %255 = vmatprep.subr.mxu0 0.0
    %256 = vmatpush1.msra.mxu0 %v130
    %257 = vmatprep.subr.mxu0 0.0
    %258 = vmatpush1.msra.mxu0 %v133
    %259 = vmatprep.subr.mxu0 0.0
    %260 = vmatpush1.msra.mxu0 %v136
    %261 = vmatprep.subr.mxu0 0.0
    %262 = vmatpush1.msra.mxu0 %v139
    %263 = vmatprep.subr.mxu0 0.0
    %264 = vmatpush1.msra.mxu0 %v142
    %265 = vmatprep.subr.mxu0 0.0
    %266 = vmatpush1.msra.mxu0 %v145
    %267 = vmatprep.subr.mxu0 0.0
    %268 = vmatpush1.msra.mxu0 %v148
    %269 = vmatprep.subr.mxu0 0.0
    %270 = vmatpush1.msra.mxu0 0.0
    %271 = vmatprep.subr.mxu0 0.0
    %272 = vmatpush1.msra.mxu0 0.0
    %273 = vmatprep.subr.mxu0 0.0
    %274 = vmatpush1.msra.mxu0 0.0
    %275 = vmatprep.subr.mxu0 0.0
    %276 = vmatpush1.msra.mxu0 0.0
    %277 = vmatprep.subr.mxu0 0.0
    %278 = vmatpush1.msra.mxu0 0.0
    %279 = vmatprep.subr.mxu0 0.0
    %280 = vmatpush1.msra.mxu0 0.0
    %281 = vmatprep.subr.mxu0 0.0
    %282 = vmatpush1.msra.mxu0 0.0
    %283 = vmatprep.subr.mxu0 0.0
    %284 = vmatpush1.msra.mxu0 0.0
    %285 = vmatprep.subr.mxu0 0.0
    %286 = vmatpush1.msra.mxu0 0.0
    %287 = vmatprep.subr.mxu0 0.0
    %288 = vmatpush1.msra.mxu0 0.0
    %289 = vmatprep.subr.mxu0 0.0
    %290 = vmatpush1.msra.mxu0 0.0
    %291 = vmatprep.subr.mxu0 0.0
    %292 = vmatpush1.msra.mxu0 0.0
    %293 = vmatprep.subr.mxu0 0.0
    %294 = vmatpush1.msra.mxu0 0.0
    %295 = vmatprep.subr.mxu0 0.0
    %296 = vmatpush1.msra.mxu0 0.0
    %297 = vmatprep.subr.mxu0 0.0
    %298 = vmatpush1.msra.mxu0 0.0
    %299 = vmatprep.subr.mxu0 0.0
    %300 = vmatpush1.msra.mxu0 0.0
    %301 = vmatprep.mubr.f32.mxu0 0.0
    %302 = vmatmul.mubr.f32.gmra.mrb[0].mxu0 %v100
    %v303 = vpop.f32.mrb[0].mxu0
    %v304 = vadd.f32 %v162, %v303
    %v305 = vpop.f32.mrb[0].mxu0
    %306 = vdwg.mxu0
    %v310 = vcombine.low %v233, %v235
    %v312 = vunpack.c.l.s4 1966171168
    %v313 = vunpack.c.0.s8 %v312
    %v314 = vlaneseq
    %v315 = vshrl.u32 %v314, 7
    %v316 = vsub.s32 %v313, %v315
    %v317 = vrot.slane %v310, %v316
    %v319 = vunpack.c.l.s4 1966171168
    %v320 = vunpack.c.0.s8 %v319
    %v321 = vlaneseq
    %v322 = vshrl.u32 %v321, 7
    %v323 = vsub.s32 %v320, %v322
    %v324 = vrot.slane %v304, %v323
    %v325 = vcombine.low %v317, %v324
    %v327 = vunpack.c.l.s4 1966171168
    %v328 = vunpack.c.0.s8 %v327
    %v329 = vlaneseq
    %v330 = vshrl.u32 %v329, 7
    %v331 = vsub.s32 %v328, %v330
    %v332 = vrot.slane %v325, %v331
    %v334 = vlaneseq
    %vm335 = vcmp.ge.s32.totalorder %v334, 0
    %vm336 = vcmp.lt.s32.totalorder %v334, 384
    %vm337 = vmand %vm335, %vm336
    %338 = vst.msk [vmem:[#allocation3] sm:$0x7] %vm337, %v332
    %v339 = vld [vmem:[%s6] sm:$0x3]
    %v340 = vld [vmem:[%s7] sm:$0x1]
    %v341 = vld [vmem:[%s2] sm:$0x1]
    %v342 = vld [vmem:[#allocation3] sm:$0x7]
    %v343 = vld [vmem:[#allocation11] sm:$0xff]
    %v344 = vld [vmem:[#allocation11 + $0x8] sm:$0xff]
    %v345 = vld [vmem:[#allocation11 + $0x10] sm:$0xff]
    %v346 = vld [vmem:[#allocation11 + $0x18] sm:$0xff]
    %v347 = vld [vmem:[#allocation11 + $0x20] sm:$0xff]
    %v348 = vld [vmem:[#allocation11 + $0x28] sm:$0xff]
    %v349 = vld [vmem:[#allocation11 + $0x30] sm:$0xff]
    %v350 = vld [vmem:[#allocation11 + $0x38] sm:$0xff]
    %v351 = vld [vmem:[#allocation11 + $0x40] sm:$0xff]
    %v352 = vld [vmem:[#allocation11 + $0x48] sm:$0xff]
    %v353 = vld [vmem:[#allocation11 + $0x50] sm:$0xff]
    %v354 = vld [vmem:[#allocation11 + $0x58] sm:$0xff]
    %v355 = vld [vmem:[#allocation11 + $0x60] sm:$0xff]
    %v356 = vld [vmem:[#allocation11 + $0x68] sm:$0xff]
    %v357 = vld [vmem:[#allocation11 + $0x70] sm:$0xff]
    %v358 = vld [vmem:[#allocation11 + $0x78] sm:$0xff]
    %v359 = vld [vmem:[#allocation11 + $0x80] sm:$0xff]
    %v360 = vld [vmem:[#allocation11 + $0x88] sm:$0xff]
    %v361 = vld [vmem:[#allocation11 + $0x90] sm:$0xff]
    %v362 = vld [vmem:[#allocation11 + $0x98] sm:$0xff]
    %v363 = vld [vmem:[#allocation11 + $0xa0] sm:$0xff]
    %v364 = vld [vmem:[#allocation11 + $0xa8] sm:$0xff]
    %v365 = vld [vmem:[#allocation11 + $0xb0] sm:$0xff]
    %v366 = vld [vmem:[#allocation11 + $0xb8] sm:$0xff]
    %v367 = vld [vmem:[#allocation11 + $0xc0] sm:$0xff]
    %v368 = vld [vmem:[#allocation11 + $0xc8] sm:$0xff]
    %v369 = vld [vmem:[#allocation11 + $0xd0] sm:$0xff]
    %v370 = vld [vmem:[#allocation11 + $0xd8] sm:$0xff]
    %v371 = vld [vmem:[#allocation11 + $0xe0] sm:$0xff]
    %v372 = vld [vmem:[#allocation11 + $0xe8] sm:$0xff]
    %v373 = vld [vmem:[#allocation11 + $0xf0] sm:$0xff]
    %v374 = vld [vmem:[#allocation11 + $0xf8] sm:$0xff]
    %v375 = vld [vmem:[#allocation11 + $0x100] sm:$0xff]
    %v376 = vld [vmem:[#allocation11 + $0x108] sm:$0xff]
    %v377 = vld [vmem:[#allocation11 + $0x110] sm:$0xff]
    %v378 = vld [vmem:[#allocation11 + $0x118] sm:$0xff]
    %v379 = vld [vmem:[#allocation11 + $0x120] sm:$0xff]
    %v380 = vld [vmem:[#allocation11 + $0x128] sm:$0xff]
    %v381 = vld [vmem:[#allocation11 + $0x130] sm:$0xff]
    %v382 = vld [vmem:[#allocation11 + $0x138] sm:$0xff]
    %v383 = vld [vmem:[#allocation11 + $0x140] sm:$0xff]
    %v384 = vld [vmem:[#allocation11 + $0x148] sm:$0xff]
    %v385 = vld [vmem:[#allocation11 + $0x150] sm:$0xff]
    %v386 = vld [vmem:[#allocation11 + $0x158] sm:$0xff]
    %v387 = vld [vmem:[#allocation11 + $0x160] sm:$0xff]
    %v388 = vld [vmem:[#allocation11 + $0x168] sm:$0xff]
    %v389 = vld [vmem:[#allocation11 + $0x170] sm:$0xff]
    %v390 = vld [vmem:[#allocation11 + $0x178] sm:$0xff]
    %391 = vmatprep.subr.mxu0 %v344
    %392 = vmatpush1.msra.mxu0 %v343
    %393 = vmatprep.subr.mxu0 %v347
    %394 = vmatpush1.msra.mxu0 %v346
    %395 = vmatprep.subr.mxu0 %v350
    %396 = vmatpush1.msra.mxu0 %v349
    %397 = vmatprep.subr.mxu0 %v353
    %398 = vmatpush1.msra.mxu0 %v352
    %399 = vmatprep.subr.mxu0 %v356
    %400 = vmatpush1.msra.mxu0 %v355
    %401 = vmatprep.subr.mxu0 %v359
    %402 = vmatpush1.msra.mxu0 %v358
    %403 = vmatprep.subr.mxu0 %v362
    %404 = vmatpush1.msra.mxu0 %v361
    %405 = vmatprep.subr.mxu0 %v365
    %406 = vmatpush1.msra.mxu0 %v364
    %407 = vmatprep.subr.mxu0 %v368
    %408 = vmatpush1.msra.mxu0 %v367
    %409 = vmatprep.subr.mxu0 %v371
    %410 = vmatpush1.msra.mxu0 %v370
    %411 = vmatprep.subr.mxu0 %v374
    %412 = vmatpush1.msra.mxu0 %v373
    %413 = vmatprep.subr.mxu0 %v377
    %414 = vmatpush1.msra.mxu0 %v376
    %415 = vmatprep.subr.mxu0 %v380
    %416 = vmatpush1.msra.mxu0 %v379
    %417 = vmatprep.subr.mxu0 %v383
    %418 = vmatpush1.msra.mxu0 %v382
    %419 = vmatprep.subr.mxu0 %v386
    %420 = vmatpush1.msra.mxu0 %v385
    %421 = vmatprep.subr.mxu0 %v389
    %422 = vmatpush1.msra.mxu0 %v388
    %423 = vmatprep.subr.mxu0 0.0
    %424 = vmatpush1.msra.mxu0 0.0
    %425 = vmatprep.subr.mxu0 0.0
    %426 = vmatpush1.msra.mxu0 0.0
    %427 = vmatprep.subr.mxu0 0.0
    %428 = vmatpush1.msra.mxu0 0.0
    %429 = vmatprep.subr.mxu0 0.0
    %430 = vmatpush1.msra.mxu0 0.0
    %431 = vmatprep.subr.mxu0 0.0
    %432 = vmatpush1.msra.mxu0 0.0
    %433 = vmatprep.subr.mxu0 0.0
    %434 = vmatpush1.msra.mxu0 0.0
    %435 = vmatprep.subr.mxu0 0.0
    %436 = vmatpush1.msra.mxu0 0.0
    %437 = vmatprep.subr.mxu0 0.0
    %438 = vmatpush1.msra.mxu0 0.0
    %439 = vmatprep.subr.mxu0 0.0
    %440 = vmatpush1.msra.mxu0 0.0
    %441 = vmatprep.subr.mxu0 0.0
    %442 = vmatpush1.msra.mxu0 0.0
    %443 = vmatprep.subr.mxu0 0.0
    %444 = vmatpush1.msra.mxu0 0.0
    %445 = vmatprep.subr.mxu0 0.0
    %446 = vmatpush1.msra.mxu0 0.0
    %447 = vmatprep.subr.mxu0 0.0
    %448 = vmatpush1.msra.mxu0 0.0
    %449 = vmatprep.subr.mxu0 0.0
    %450 = vmatpush1.msra.mxu0 0.0
    %451 = vmatprep.subr.mxu0 0.0
    %452 = vmatpush1.msra.mxu0 0.0
    %453 = vmatprep.subr.mxu0 0.0
    %454 = vmatpush1.msra.mxu0 0.0
    %455 = vmatprep.mubr.f32.mxu0 0.0
    %456 = vmatmul.mubr.f32.gmra.mrb[0].mxu0 %v341
    %v457 = vpop.f32.mrb[0].mxu0
    %v458 = vadd.f32 0.0, %v457
    %v459 = vpop.f32.mrb[0].mxu0
    %v460 = vadd.f32 0.0, %v459
    %461 = vdwg.mxu0
    %462 = vmatprep.subr.mxu0 0.0
    %463 = vmatpush1.msra.mxu0 %v345
    %464 = vmatprep.subr.mxu0 0.0
    %465 = vmatpush1.msra.mxu0 %v348
    %466 = vmatprep.subr.mxu0 0.0
    %467 = vmatpush1.msra.mxu0 %v351
    %468 = vmatprep.subr.mxu0 0.0
    %469 = vmatpush1.msra.mxu0 %v354
    %470 = vmatprep.subr.mxu0 0.0
    %471 = vmatpush1.msra.mxu0 %v357
    %472 = vmatprep.subr.mxu0 0.0
    %473 = vmatpush1.msra.mxu0 %v360
    %474 = vmatprep.subr.mxu0 0.0
    %475 = vmatpush1.msra.mxu0 %v363
    %476 = vmatprep.subr.mxu0 0.0
    %477 = vmatpush1.msra.mxu0 %v366
    %478 = vmatprep.subr.mxu0 0.0
    %479 = vmatpush1.msra.mxu0 %v369
    %480 = vmatprep.subr.mxu0 0.0
    %481 = vmatpush1.msra.mxu0 %v372
    %482 = vmatprep.subr.mxu0 0.0
    %483 = vmatpush1.msra.mxu0 %v375
    %484 = vmatprep.subr.mxu0 0.0
    %485 = vmatpush1.msra.mxu0 %v378
    %486 = vmatprep.subr.mxu0 0.0
    %487 = vmatpush1.msra.mxu0 %v381
    %488 = vmatprep.subr.mxu0 0.0
    %489 = vmatpush1.msra.mxu0 %v384
    %490 = vmatprep.subr.mxu0 0.0
    %491 = vmatpush1.msra.mxu0 %v387
    %492 = vmatprep.subr.mxu0 0.0
    %493 = vmatpush1.msra.mxu0 %v390
    %494 = vmatprep.subr.mxu0 0.0
    %495 = vmatpush1.msra.mxu0 0.0
    %496 = vmatprep.subr.mxu0 0.0
    %497 = vmatpush1.msra.mxu0 0.0
    %498 = vmatprep.subr.mxu0 0.0
    %499 = vmatpush1.msra.mxu0 0.0
    %500 = vmatprep.subr.mxu0 0.0
    %501 = vmatpush1.msra.mxu0 0.0
    %502 = vmatprep.subr.mxu0 0.0
    %503 = vmatpush1.msra.mxu0 0.0
    %504 = vmatprep.subr.mxu0 0.0
    %505 = vmatpush1.msra.mxu0 0.0
    %506 = vmatprep.subr.mxu0 0.0
    %507 = vmatpush1.msra.mxu0 0.0
    %508 = vmatprep.subr.mxu0 0.0
    %509 = vmatpush1.msra.mxu0 0.0
    %510 = vmatprep.subr.mxu0 0.0
    %511 = vmatpush1.msra.mxu0 0.0
    %512 = vmatprep.subr.mxu0 0.0
    %513 = vmatpush1.msra.mxu0 0.0
    %514 = vmatprep.subr.mxu0 0.0
    %515 = vmatpush1.msra.mxu0 0.0
    %516 = vmatprep.subr.mxu0 0.0
    %517 = vmatpush1.msra.mxu0 0.0
    %518 = vmatprep.subr.mxu0 0.0
    %519 = vmatpush1.msra.mxu0 0.0
    %520 = vmatprep.subr.mxu0 0.0
    %521 = vmatpush1.msra.mxu0 0.0
    %522 = vmatprep.subr.mxu0 0.0
    %523 = vmatpush1.msra.mxu0 0.0
    %524 = vmatprep.subr.mxu0 0.0
    %525 = vmatpush1.msra.mxu0 0.0
    %526 = vmatprep.mubr.f32.mxu0 0.0
    %527 = vmatmul.mubr.f32.gmra.mrb[0].mxu0 %v341
    %v528 = vpop.f32.mrb[0].mxu0
    %v529 = vadd.f32 0.0, %v528
    %v530 = vpop.f32.mrb[0].mxu0
    %531 = vdwg.mxu0
    %v534 = vcombine.low %v458, %v460
    %v536 = vunpack.c.l.s4 1966171168
    %v537 = vunpack.c.0.s8 %v536
    %v538 = vlaneseq
    %v539 = vshrl.u32 %v538, 7
    %v540 = vsub.s32 %v537, %v539
    %v541 = vrot.slane %v534, %v540
    %v543 = vunpack.c.l.s4 1966171168
    %v544 = vunpack.c.0.s8 %v543
    %v545 = vlaneseq
    %v546 = vshrl.u32 %v545, 7
    %v547 = vsub.s32 %v544, %v546
    %v548 = vrot.slane %v541, %v547
    %v550 = vadd.f32 %v342, %v548
    %v551 = vadd.f32 %v550, %v339
    %v552 = vxor.u32 %v551, 2147483648
    %v553 = vmul.f32 %v552, 1.442695
    %v554 = vpow.pop %v553
    %v555 = vadd.f32 %v554, 1.0
    %v556 = vrcp.pop %v555
    %v557 = vmul.f32 1.0, %v556
    %v558 = vadd.f32 %v529, %v340
    %v559 = vmul.f32 %v557, %v558
    %v561 = vrot.slane %v342, 2
    %v563 = vadd.f32 %v561, %v559
    %v564 = vtanh.pop %v563
    %v566 = vrot.slane %v557, 1
    %v568 = vsub.f32 1.0, %v566
    %v569 = vmul.f32 %v568, %v564
    %v570 = vmul.f32 %v566, %v341
    %v571 = vadd.f32 %v569, %v570
    %572 = vst [vmem:[#allocation4] sm:$0x1] %v571
    %573 = vst [vmem:[#allocation15] sm:$0x1] %v571
    %v574 = vld [vmem:[#allocation4] sm:$0x1]
    %v575 = vld [vmem:[#allocation12] sm:$0xff]
    %v576 = vld [vmem:[#allocation12 + $0x8] sm:$0xff]
    %v577 = vld [vmem:[#allocation12 + $0x10] sm:$0xff]
    %v578 = vld [vmem:[#allocation12 + $0x18] sm:$0xff]
    %v579 = vld [vmem:[#allocation12 + $0x20] sm:$0xff]
    %v580 = vld [vmem:[#allocation12 + $0x28] sm:$0xff]
    %v581 = vld [vmem:[#allocation12 + $0x30] sm:$0xff]
    %v582 = vld [vmem:[#allocation12 + $0x38] sm:$0xff]
    %v583 = vld [vmem:[#allocation12 + $0x40] sm:$0xff]
    %v584 = vld [vmem:[#allocation12 + $0x48] sm:$0xff]
    %v585 = vld [vmem:[#allocation12 + $0x50] sm:$0xff]
    %v586 = vld [vmem:[#allocation12 + $0x58] sm:$0xff]
    %v587 = vld [vmem:[#allocation12 + $0x60] sm:$0xff]
    %v588 = vld [vmem:[#allocation12 + $0x68] sm:$0xff]
    %v589 = vld [vmem:[#allocation12 + $0x70] sm:$0xff]
    %v590 = vld [vmem:[#allocation12 + $0x78] sm:$0xff]
    %v591 = vld [vmem:[%s9] sm:$0x1]
    %592 = vmatprep.subr.mxu0 0.0
    %593 = vmatpush1.msra.mxu0 %v575
    %594 = vmatprep.subr.mxu0 0.0
    %595 = vmatpush1.msra.mxu0 %v576
    %596 = vmatprep.subr.mxu0 0.0
    %597 = vmatpush1.msra.mxu0 %v577
    %598 = vmatprep.subr.mxu0 0.0
    %599 = vmatpush1.msra.mxu0 %v578
    %600 = vmatprep.subr.mxu0 0.0
    %601 = vmatpush1.msra.mxu0 %v579
    %602 = vmatprep.subr.mxu0 0.0
    %603 = vmatpush1.msra.mxu0 %v580
    %604 = vmatprep.subr.mxu0 0.0
    %605 = vmatpush1.msra.mxu0 %v581
    %606 = vmatprep.subr.mxu0 0.0
    %607 = vmatpush1.msra.mxu0 %v582
    %608 = vmatprep.subr.mxu0 0.0
    %609 = vmatpush1.msra.mxu0 %v583
    %610 = vmatprep.subr.mxu0 0.0
    %611 = vmatpush1.msra.mxu0 %v584
    %612 = vmatprep.subr.mxu0 0.0
    %613 = vmatpush1.msra.mxu0 %v585
    %614 = vmatprep.subr.mxu0 0.0
    %615 = vmatpush1.msra.mxu0 %v586
    %616 = vmatprep.subr.mxu0 0.0
    %617 = vmatpush1.msra.mxu0 %v587
    %618 = vmatprep.subr.mxu0 0.0
    %619 = vmatpush1.msra.mxu0 %v588
    %620 = vmatprep.subr.mxu0 0.0
    %621 = vmatpush1.msra.mxu0 %v589
    %622 = vmatprep.subr.mxu0 0.0
    %623 = vmatpush1.msra.mxu0 %v590
    %624 = vmatprep.subr.mxu0 0.0
    %625 = vmatpush1.msra.mxu0 0.0
    %626 = vmatprep.subr.mxu0 0.0
    %627 = vmatpush1.msra.mxu0 0.0
    %628 = vmatprep.subr.mxu0 0.0
    %629 = vmatpush1.msra.mxu0 0.0
    %630 = vmatprep.subr.mxu0 0.0
    %631 = vmatpush1.msra.mxu0 0.0
    %632 = vmatprep.subr.mxu0 0.0
    %633 = vmatpush1.msra.mxu0 0.0
    %634 = vmatprep.subr.mxu0 0.0
    %635 = vmatpush1.msra.mxu0 0.0
    %636 = vmatprep.subr.mxu0 0.0
    %637 = vmatpush1.msra.mxu0 0.0
    %638 = vmatprep.subr.mxu0 0.0
    %639 = vmatpush1.msra.mxu0 0.0
    %640 = vmatprep.subr.mxu0 0.0
    %641 = vmatpush1.msra.mxu0 0.0
    %642 = vmatprep.subr.mxu0 0.0
    %643 = vmatpush1.msra.mxu0 0.0
    %644 = vmatprep.subr.mxu0 0.0
    %645 = vmatpush1.msra.mxu0 0.0
    %646 = vmatprep.subr.mxu0 0.0
    %647 = vmatpush1.msra.mxu0 0.0
    %648 = vmatprep.subr.mxu0 0.0
    %649 = vmatpush1.msra.mxu0 0.0
    %650 = vmatprep.subr.mxu0 0.0
    %651 = vmatpush1.msra.mxu0 0.0
    %652 = vmatprep.subr.mxu0 0.0
    %653 = vmatpush1.msra.mxu0 0.0
    %654 = vmatprep.subr.mxu0 0.0
    %655 = vmatpush1.msra.mxu0 0.0
    %656 = vmatprep.mubr.f32.mxu0 0.0
    %657 = vmatmul.mubr.f32.gmra.mrb[0].mxu0 %v574
    %v658 = vpop.f32.mrb[0].mxu0
    %v659 = vadd.f32 %v591, %v658
    %v660 = vpop.f32.mrb[0].mxu0
    %661 = vdwg.mxu0
    %vm662 = vcmask 1040384
    %v663 = vsel %vm662, %v659, -inf
    %664 = vmax.xlane.f32.xlu0 %v663
    %v665 = vpop.xlane.xlu0 %664
    %v666 = vsub.f32 %v659, %v665
    %v667 = vmul.f32 %v666, 1.442695
    %v668 = vpow.pop %v667
    %v669 = vsel %vm662, %v668, 0.0
    %670 = vadd.xlane.f32.xlu0 %v669
    %v671 = vpop.xlane.xlu0 %670
    %v672 = vlog2.pop %v671
    %v673 = vmul.f32 %v672, 0.6931472
    %v674 = vsub.f32 %v666, %v673
    %675 = vst [vmem:[#allocation14] sm:$0x1] %v674
    // Predicated region
    $region58: #{tpu_custom_call.1} parent=1 // pred_check
      _
    $region59: #{tpu_custom_call.1} parent=1 // pred_check_branch
      %677 = sbr.rel (0) target = $region61
    $region60: #{tpu_custom_call.1} parent=1 // pred_region
      %s679 = ssub.s32 16, 16
      %680 = vsyncadd [#allocation8], %s679
      %s682 = sshll.u32 [#allocation14], 4
      %s683 = int_to_ptr.vmem [resolvable:$true] %s682
      %685 = dma.vmem_to_hbm [thread:$0]  %s683, 16, %s10, [#allocation8]
    $region61: #{tpu_custom_call.1} parent=1 // pred_fallthru
      _
    // Predicated region
    $region62: #{tpu_custom_call.1} parent=1 // pred_check
      _
    $region63: #{tpu_custom_call.1} parent=1 // pred_check_branch
      %687 = sbr.rel (0) target = $region65
    $region64: #{tpu_custom_call.1} parent=1 // pred_region
      %s689 = ssub.s32 16, 16
      %690 = vsyncadd [#allocation16], %s689
      %s692 = sshll.u32 [#allocation15], 4
      %s693 = int_to_ptr.vmem [resolvable:$true] %s692
      %695 = dma.vmem_to_hbm [thread:$0]  %s693, 16, %s11, [#allocation16]
    $region65: #{tpu_custom_call.1} parent=1 // pred_fallthru
      _
    // Predicated region
    $region66: #{tpu_custom_call.1} parent=1 // pred_check
      _
    $region67: #{tpu_custom_call.1} parent=1 // pred_check_branch
      %697 = sbr.rel (0) target = $region69
    $region68: #{tpu_custom_call.1} parent=1 // pred_region
      %698 = dma.done [#allocation8], 16
    $region69: #{tpu_custom_call.1} parent=1 // pred_fallthru
      _
    // Predicated region
    $region70: #{tpu_custom_call.1} parent=1 // pred_check
      _
    $region71: #{tpu_custom_call.1} parent=1 // pred_check_branch
      %700 = sbr.rel (0) target = $region73
    $region72: #{tpu_custom_call.1} parent=1 // pred_region
      %701 = dma.done [#allocation16], 16
    $region73: #{tpu_custom_call.1} parent=1 // pred_fallthru
      _
    %702 = vsyncpa [#allocation7], 1
    %703 = vsyncpa [#allocation10], 1
    %704 = vsyncpa [#allocation13], 1
    %705 = vsyncpa [#allocation8], 1
    %706 = vsyncpa [#allocation16], 1

</llo_original>
